<compile_context>
chip_gen: v7x
topology: tpu7x:2x2x1
jax: 0.10.0
libtpu: 0.0.40
codegen_flags: <defaults>
</compile_context>

<pallas_src>
import jax
import jax.numpy as jnp
from jax import lax
from jax.experimental import pallas as pl
from jax.experimental.pallas import tpu as pltpu

LEAKY_SLOPE = 0.01  # F.leaky_relu default negative_slope


def _leaky_relu(v):
    # valid for 0 < slope < 1
    return jnp.maximum(v, LEAKY_SLOPE * v)


def mamo_kernel(x_ref, w1_ref, w2_ref, b2_ref, w3_ref, b3_ref, o_ref):
    """One batch tile of the MAMORec MLP.

    Shapes per grid step (tb = batch tile size):
      x_ref  : (tb, D)   input tile, batch on sublanes (as stored in HBM)
      w1_ref : (H, D)    hiddenLayer1.weight  (PyTorch (out, in) layout)
      w2_ref : (H, H)    hiddenLayer2.weight
      b2_ref : (H, 1)    hiddenLayer2.bias as a column (f32, broadcasts over lanes)
      w3_ref : (H, 1)    outputLayer.weight as a column (f32)
      b3_ref : (1, 1)    outputLayer.bias, SMEM scalar (f32)
      o_ref  : (1, tb)   lane-dense output row
    """
    x = x_ref[...]  # (tb, D)

    # Layer 1: W1 @ x^T with the transpose folded into the matmul
    # (contract W1 dim 1 with x dim 1) -> (H, tb), batch lands on lanes.
    h1 = lax.dot_general(
        w1_ref[...], x,
        dimension_numbers=(((1,), (1,)), ((), ())),
        preferred_element_type=jnp.float32,
    )
    h1 = _leaky_relu(h1).astype(w2_ref.dtype)

    # Layer 2: (H, H) @ (H, tb) + b2 -> (H, tb), leaky_relu.  f32 accumulation.
    h2 = jnp.dot(w2_ref[...], h1, preferred_element_type=jnp.float32) + b2_ref[...]
    h2 = _leaky_relu(h2)

    # Output layer: H -> 1 projection as VPU multiply + XLU sublane reduce
    # (cheaper than an M=1 MXU matmul); result stays lane-dense (1, tb).
    out = jnp.sum(h2 * w3_ref[...], axis=0, keepdims=True) + b3_ref[0, 0]
    o_ref[...] = out.astype(o_ref.dtype)


def _choose_tb(B, D, itemsize, *, x_pipeline_budget_bytes=8 << 20, min_steps=4):
    """Pick a batch tile: big enough to amortize per-step overhead, small enough to
    fit the double-buffered x block in the VMEM budget, and balanced so the grid
    keeps >= min_steps steps (v7x megacore) without rounding waste."""
    lanes = pl.cdiv(B, 128) * 128
    # VMEM bytes per batch row of the x block (lane dim pads up to 128).
    vmem_row_bytes = pl.cdiv(D, 128) * 128 * itemsize
    cap = max(128, (x_pipeline_budget_bytes // (2 * vmem_row_bytes)) // 128 * 128)
    steps = max(min_steps, pl.cdiv(lanes, cap))
    tb = pl.cdiv(pl.cdiv(lanes, steps), 128) * 128
    return min(max(tb, 128), cap)


def mamo_forward(x, params, *, tb=None):
    """x: (B, D). params: PyTorch-layout weights (f32). Returns (B, 1) in x.dtype.

    Compute/streaming dtype follows x.dtype (pass bf16 x for ~2x less HBM read);
    accumulation and biases stay f32.
    """
    B, D = x.shape
    H = D // 2
    cdt = x.dtype

    if tb is None:
        tb = _choose_tb(B, D, x.dtype.itemsize)
    else:
        tb = max(128, pl.cdiv(tb, 128) * 128)
    grid = (pl.cdiv(B, tb),)

    # Kernel-side parameter layouts (tiny, constant-sized ops).
    w1 = params["w1"].astype(cdt)                      # (H, D)  PyTorch (out, in)
    w2 = params["w2"].astype(cdt)                      # (H, H)
    b2 = params["b2"].reshape(H, 1).astype(jnp.float32)   # column, lane-broadcast
    w3 = params["w3"].reshape(H, 1).astype(jnp.float32)   # (1, H) -> (H, 1) column
    b3 = params["b3"].reshape(1, 1).astype(jnp.float32)   # SMEM scalar, keep f32

    out_row = pl.pallas_call(
        mamo_kernel,
        out_shape=jax.ShapeDtypeStruct((1, B), cdt),
        grid=grid,
        in_specs=[
            pl.BlockSpec((tb, D), lambda i: (i, 0)),            # x tile (pipelined)
            pl.BlockSpec((H, D), lambda i: (0, 0)),             # W1, VMEM-resident
            pl.BlockSpec((H, H), lambda i: (0, 0)),             # W2, VMEM-resident
            pl.BlockSpec((H, 1), lambda i: (0, 0)),             # b2 column
            pl.BlockSpec((H, 1), lambda i: (0, 0)),             # w3 column
            pl.BlockSpec(memory_space=pltpu.MemorySpace.SMEM),  # b3 scalar
        ],
        out_specs=pl.BlockSpec((1, tb), lambda i: (0, i)),      # lane-dense output
        compiler_params=pltpu.CompilerParams(
            dimension_semantics=("parallel",),
            vmem_limit_bytes=32 * 1024 * 1024,
        ),
    )(x, w1, w2, b2, w3, b3)

    return out_row.T  # (B, 1)


def init_params(key, input_dim):
    """Deterministic synthetic parameters in PyTorch nn.Linear layout (out, in)."""
    hidden = input_dim // 2
    k1, k2, k3, k4, k5 = jax.random.split(key, 5)
    return {
        "w1": jax.random.normal(k1, (hidden, input_dim), jnp.float32) * 0.1,
        "w2": jax.random.normal(k2, (hidden, hidden), jnp.float32) * 0.1,
        "b2": jax.random.normal(k3, (hidden,), jnp.float32) * 0.1,
        "w3": jax.random.normal(k4, (1, hidden), jnp.float32) * 0.1,
        "b3": jax.random.normal(k5, (1,), jnp.float32) * 0.1,
    }


def mamo_reference(x, p):
    """Plain-JAX reference of the PyTorch forward, for verification."""
    xf = x.astype(jnp.float32)
    h1 = jax.nn.leaky_relu(xf @ p["w1"].T, negative_slope=LEAKY_SLOPE)
    h2 = jax.nn.leaky_relu(h1 @ p["w2"].T + p["b2"], negative_slope=LEAKY_SLOPE)
    return h2 @ p["w3"].T + p["b3"]


if __name__ == "__main__":
    key = jax.random.PRNGKey(0)
    kx, kp = jax.random.split(key)

    # inputDim = 32 (hidden = 16).  B = 300 -> tb = 128, 3 grid steps with a
    # partial boundary block on both the input rows and the output lanes.
    B, D = 300, 32
    x = jax.random.normal(kx, (B, D), jnp.float32)
    params = init_params(kp, D)

    out = jax.block_until_ready(mamo_forward(x, params))
    ref = mamo_reference(x, params)
    assert out.shape == (B, 1), out.shape
    assert jnp.allclose(out, ref, atol=1e-4, rtol=1e-4), float(
        jnp.max(jnp.abs(out - ref))
    )

    # Larger batch: exercises the auto tile-size heuristic (tb=1024, 4 steps)
    # and the masked boundary handling on the last tile.
    B2 = 4000
    x2 = jax.random.normal(kx, (B2, D), jnp.float32)
    out2 = jax.block_until_ready(mamo_forward(x2, params))
    ref2 = mamo_reference(x2, params)
    assert out2.shape == (B2, 1), out2.shape
    assert jnp.allclose(out2, ref2, atol=1e-4, rtol=1e-4), float(
        jnp.max(jnp.abs(out2 - ref2))
    )

    # bf16 streaming path (halves the dominant HBM read); f32 accumulation keeps
    # the result close to the f32 reference, but tolerance must be looser.
    out_bf = jax.block_until_ready(mamo_forward(x.astype(jnp.bfloat16), params))
    assert out_bf.shape == (B, 1), out_bf.shape
    assert jnp.allclose(out_bf.astype(jnp.float32), ref, atol=1e-1, rtol=1e-1), float(
        jnp.max(jnp.abs(out_bf.astype(jnp.float32) - ref))
    )

    print("KERNEL_OK")
</pallas_src>

<mosaic_0001>
module attributes {stable_mosaic.version = 11 : i64} {
  func.func @mamo_kernel(%arg0: i32, %arg1: memref<128x32xf32, #tpu.memory_space<vmem>>, %arg2: memref<16x32xf32, #tpu.memory_space<vmem>>, %arg3: memref<16x16xf32, #tpu.memory_space<vmem>>, %arg4: memref<16x1xf32, #tpu.memory_space<vmem>>, %arg5: memref<16x1xf32, #tpu.memory_space<vmem>>, %arg6: memref<1x1xf32, #tpu.memory_space<smem>>, %arg7: memref<1x128xf32, #tpu.memory_space<vmem>>) attributes {dimension_semantics = [#tpu.dimension_semantics<parallel>], iteration_bounds = array<i64: 3>, scalar_prefetch = 0 : i64, scratch_operands = 0 : i64, tpu.core_type = #tpu.core_type<tc>, window_params = [{transform_indices = @transform_0, window_bounds = array<i64: 128, 32>}, {pipeline_mode = #tpu.pipeline_mode<synchronous>, transform_indices = @transform_1, window_bounds = array<i64: 16, 32>}, {pipeline_mode = #tpu.pipeline_mode<synchronous>, transform_indices = @transform_2, window_bounds = array<i64: 16, 16>}, {pipeline_mode = #tpu.pipeline_mode<synchronous>, transform_indices = @transform_3, window_bounds = array<i64: 16, 1>}, {pipeline_mode = #tpu.pipeline_mode<synchronous>, transform_indices = @transform_4, window_bounds = array<i64: 16, 1>}, {transform_indices = @transform_5, window_bounds = array<i64: 1, 1>}, {transform_indices = @transform_6, window_bounds = array<i64: 1, 128>}]} {
    %c0 = arith.constant 0 : index
    %c0_0 = arith.constant 0 : index
    %0 = vector.load %arg1[%c0, %c0_0] : memref<128x32xf32, #tpu.memory_space<vmem>>, vector<128x32xf32>
    %c0_1 = arith.constant 0 : index
    %c0_2 = arith.constant 0 : index
    %1 = vector.load %arg2[%c0_1, %c0_2] : memref<16x32xf32, #tpu.memory_space<vmem>>, vector<16x32xf32>
    %cst = arith.constant dense<0.000000e+00> : vector<16x128xf32>
    %2 = tpu.matmul %1, %0, %cst {dimension_numbers = #tpu.dot_dimension_numbers<[1], [1], [0], [0], [0, 0, 1, 0], [], []>} : vector<16x32xf32>, vector<128x32xf32>, vector<16x128xf32> -> vector<16x128xf32>
    %cst_3 = arith.constant 0.00999999977 : f32
    %3 = vector.broadcast %cst_3 : f32 to vector<16x128xf32>
    %4 = arith.mulf %3, %2 : vector<16x128xf32>
    %5 = arith.maximumf %2, %4 : vector<16x128xf32>
    %c0_4 = arith.constant 0 : index
    %c0_5 = arith.constant 0 : index
    %6 = vector.load %arg3[%c0_4, %c0_5] : memref<16x16xf32, #tpu.memory_space<vmem>>, vector<16x16xf32>
    %cst_6 = arith.constant dense<0.000000e+00> : vector<16x128xf32>
    %7 = tpu.matmul %6, %5, %cst_6 {dimension_numbers = #tpu.dot_dimension_numbers<[1], [0], [0], [1], [0, 0, 1, 1], [], []>} : vector<16x16xf32>, vector<16x128xf32>, vector<16x128xf32> -> vector<16x128xf32>
    %c0_7 = arith.constant 0 : index
    %c0_8 = arith.constant 0 : index
    %8 = vector.load %arg4[%c0_7, %c0_8] : memref<16x1xf32, #tpu.memory_space<vmem>>, vector<16x1xf32>
    %9 = vector.broadcast %8 : vector<16x1xf32> to vector<16x128xf32>
    %10 = arith.addf %7, %9 : vector<16x128xf32>
    %cst_9 = arith.constant 0.00999999977 : f32
    %11 = vector.broadcast %cst_9 : f32 to vector<16x128xf32>
    %12 = arith.mulf %11, %10 : vector<16x128xf32>
    %13 = arith.maximumf %10, %12 : vector<16x128xf32>
    %c0_10 = arith.constant 0 : index
    %c0_11 = arith.constant 0 : index
    %14 = vector.load %arg5[%c0_10, %c0_11] : memref<16x1xf32, #tpu.memory_space<vmem>>, vector<16x1xf32>
    %15 = vector.broadcast %14 : vector<16x1xf32> to vector<16x128xf32>
    %16 = arith.mulf %13, %15 : vector<16x128xf32>
    %cst_12 = arith.constant dense<0.000000e+00> : vector<128xf32>
    %17 = vector.multi_reduction <add>, %16, %cst_12 [0] : vector<16x128xf32> to vector<128xf32>
    %18 = vector.shape_cast %17 : vector<128xf32> to vector<1x128xf32>
    %c0_13 = arith.constant 0 : index
    %c0_14 = arith.constant 0 : index
    %19 = memref.load %arg6[%c0_13, %c0_14] : memref<1x1xf32, #tpu.memory_space<smem>>
    %20 = vector.broadcast %19 : f32 to vector<1x128xf32>
    %21 = arith.addf %18, %20 : vector<1x128xf32>
    %c0_15 = arith.constant 0 : index
    %c0_16 = arith.constant 0 : index
    %22 = vector.load %arg7[%c0_15, %c0_16] : memref<1x128xf32, #tpu.memory_space<vmem>>, vector<1x128xf32>
    tpu.vector_store %arg7[%c0_15, %c0_16], %21 {strides = array<i32>} : memref<1x128xf32, #tpu.memory_space<vmem>>, vector<1x128xf32>,
    return
  }
  func.func @transform_0(%arg0: i32) -> (i32, i32) {
    %c0_i32 = arith.constant 0 : i32
    %c0_i32_0 = arith.constant 0 : i32
    return %arg0, %c0_i32 : i32, i32
  }
  func.func @transform_1(%arg0: i32) -> (i32, i32) {
    %c0_i32 = arith.constant 0 : i32
    %c0_i32_0 = arith.constant 0 : i32
    %c0_i32_1 = arith.constant 0 : i32
    return %c0_i32, %c0_i32_0 : i32, i32
  }
  func.func @transform_2(%arg0: i32) -> (i32, i32) {
    %c0_i32 = arith.constant 0 : i32
    %c0_i32_0 = arith.constant 0 : i32
    %c0_i32_1 = arith.constant 0 : i32
    return %c0_i32, %c0_i32_0 : i32, i32
  }
  func.func @transform_3(%arg0: i32) -> (i32, i32) {
    %c0_i32 = arith.constant 0 : i32
    %c0_i32_0 = arith.constant 0 : i32
    %c0_i32_1 = arith.constant 0 : i32
    return %c0_i32, %c0_i32_0 : i32, i32
  }
  func.func @transform_4(%arg0: i32) -> (i32, i32) {
    %c0_i32 = arith.constant 0 : i32
    %c0_i32_0 = arith.constant 0 : i32
    %c0_i32_1 = arith.constant 0 : i32
    return %c0_i32, %c0_i32_0 : i32, i32
  }
  func.func @transform_5(%arg0: i32) -> (i32, i32) {
    %c0_i32 = arith.constant 0 : i32
    %c0_i32_0 = arith.constant 0 : i32
    %c0_i32_1 = arith.constant 0 : i32
    return %c0_i32, %c0_i32_0 : i32, i32
  }
  func.func @transform_6(%arg0: i32) -> (i32, i32) {
    %c0_i32 = arith.constant 0 : i32
    %c0_i32_0 = arith.constant 0 : i32
    return %c0_i32, %arg0 : i32, i32
  }
}

</mosaic_0001>

<llo_original>
// kernel: tpu_custom_call.1
$region0: #{tpu_custom_call.1}
  #allocation0 [shape = 'u32[]', space=smem, size = 0x4, offset = 0x4, fixed_abs, tag = 'smem constant byte address 0x4 - core index']
  #allocation1 [shape = 'u32[144,128]{1,0:T(1,128)}', space=vmem, size = 0x12000, scoped, tag = 'internal scratch']
  #allocation2 [shape = 'f32[1,1]{1,0:T(1,128)S(6)}', space=smem, size = 0x200, scoped, tag = 'scoped memory for tpu_custom_call.1']
  %s0 = inlined_call_operand.vmem [shape: f32[300,32], index: 0, kind: input, shape index: {}]
  %s1 = inlined_call_operand.vmem [shape: f32[16,32], index: 1, kind: input, shape index: {}]
  %s2 = inlined_call_operand.vmem [shape: f32[16,16], index: 2, kind: input, shape index: {}]
  %s3 = inlined_call_operand.vmem [shape: f32[16,1], index: 3, kind: input, shape index: {}]
  %s4 = inlined_call_operand.vmem [shape: f32[16,1], index: 4, kind: input, shape index: {}]
  %s5 = inlined_call_operand.<no memory space> [shape: f32[1,1], index: 5, kind: input, shape index: {}]
  %s6 = inlined_call_operand.hbm [shape: f32[1,300], index: 6, kind: output, shape index: {}]
  %s7 = sld [smem:[#allocation0]]
  $region57: #{tpu_custom_call.1} parent=0
    _
  %s9 = ssub.s32 1, %s7
  %s10 = scalar_select 0, %s9, %s7
  %11 = sst [smem:[#allocation2]] %s5
  $region1: #{tpu_custom_call.1} parent=0
    #allocation3 [shape = 'u8[1024]{0}', space=vmem, size = 0x400, scoped, tag = 'output window, operand 0']
    #allocation4 [shape = 's32[2]{0}', space=sflag, size = 0x8, scoped, tag = 'scoped memory for tpu_custom_call.1']
    %12 = vsyncpa [#allocation4], 0
    %s13 = scalar_lea.sflag [#allocation4], 1
    %14 = vsyncpa %s13, 0
    loop: start=0, step=1, limit=5
    $region2: #{tpu_custom_call.1} parent=1 // loop_pre_header
      _
    $region3: #{tpu_custom_call.1} parent=1 // loop_header
      %s16 = sphi 0, %s20
      %p17 = scmp.ge.s32.totalorder %s16, 5
      %s26 = sphi 0, %s28
      %s29 = sphi 0, %s26
      %s30 = sphi 0, %s29
      %s46 = sphi 0, %s30
      %s50 = sphi 0, %s50
      %s52 = sphi 0, %s50
      %s53 = sphi 0, %s52
      %s67 = sphi 0, %s53
      %s71 = sphi 0, %s71
      %s73 = sphi 0, %s71
      %s74 = sphi 0, %s73
      %s88 = sphi 0, %s74
      %s92 = sphi 0, %s92
      %s94 = sphi 0, %s92
      %s95 = sphi 0, %s94
      %s109 = sphi 0, %s95
      %s113 = sphi 0, %s113
      %s115 = sphi 0, %s113
      %s116 = sphi 0, %s115
      %s130 = sphi 0, %s116
      %s134 = sphi 0, %s134
      %s136 = sphi 0, %s134
      %s137 = sphi 0, %s136
      %s151 = sphi 0, %s137
      %s157 = sphi 0, %s159
      %s160 = sphi 0, %s157
      %s161 = sphi 0, %s160
      %s177 = sphi 0, %s161
    $region4: #{tpu_custom_call.1} parent=1 // loop_header_branch
      %19 = sbr.rel (%p17) target = $region8
    $region5: #{tpu_custom_call.1} parent=1 // loop_body
      %s21 = ssub.s32 %s16, 1
      %s22 = ssub.s32 %s16, 2
      %s23 = sadd.s32 %s16, 1
      %s24 = ssub.s32 %s16, %s23
      %p25 = scmp.eq.s32.totalorder %s24, 0
      %s27 = sadd.s32 %s26, 1
      %s28 = scalar_select %p25, %s26, %s27
      %p31 = pneg %p25
      %p32 = scmp.eq.s32.totalorder %s16, 2
      %p33 = por %p31, %p32
      %p34 = scmp.ne.s32.totalorder %s26, %s29
      %p35 = scmp.eq.s32.totalorder %s16, 0
      %p36 = por %p34, %p35
      %p37 = scmp.ne.s32.totalorder %s26, %s29
      %p38 = scmp.eq.s32.totalorder %s21, 2
      %p39 = por %p37, %p38
      %p40 = scmp.ne.s32.totalorder %s29, %s30
      %p41 = scmp.eq.s32.totalorder %s21, 0
      %p42 = por %p40, %p41
      %p43 = scmp.ne.s32.totalorder %s29, %s30
      %p44 = scmp.eq.s32.totalorder %s22, 2
      %p45 = por %p43, %p44
      %p47 = scmp.ne.s32.totalorder %s30, %s46
      %p48 = scmp.eq.s32.totalorder %s22, 0
      %p49 = por %p47, %p48
      %s51 = sadd.s32 %s50, 1
      %p54 = scmp.eq.s32.totalorder %s16, 2
      %p55 = scmp.ne.s32.totalorder %s50, %s52
      %p56 = scmp.eq.s32.totalorder %s16, 0
      %p57 = por %p55, %p56
      %p58 = scmp.ne.s32.totalorder %s50, %s52
      %p59 = scmp.eq.s32.totalorder %s21, 2
      %p60 = por %p58, %p59
      %p61 = scmp.ne.s32.totalorder %s52, %s53
      %p62 = scmp.eq.s32.totalorder %s21, 0
      %p63 = por %p61, %p62
      %p64 = scmp.ne.s32.totalorder %s52, %s53
      %p65 = scmp.eq.s32.totalorder %s22, 2
      %p66 = por %p64, %p65
      %p68 = scmp.ne.s32.totalorder %s53, %s67
      %p69 = scmp.eq.s32.totalorder %s22, 0
      %p70 = por %p68, %p69
      %s72 = sadd.s32 %s71, 1
      %p75 = scmp.eq.s32.totalorder %s16, 2
      %p76 = scmp.ne.s32.totalorder %s71, %s73
      %p77 = scmp.eq.s32.totalorder %s16, 0
      %p78 = por %p76, %p77
      %p79 = scmp.ne.s32.totalorder %s71, %s73
      %p80 = scmp.eq.s32.totalorder %s21, 2
      %p81 = por %p79, %p80
      %p82 = scmp.ne.s32.totalorder %s73, %s74
      %p83 = scmp.eq.s32.totalorder %s21, 0
      %p84 = por %p82, %p83
      %p85 = scmp.ne.s32.totalorder %s73, %s74
      %p86 = scmp.eq.s32.totalorder %s22, 2
      %p87 = por %p85, %p86
      %p89 = scmp.ne.s32.totalorder %s74, %s88
      %p90 = scmp.eq.s32.totalorder %s22, 0
      %p91 = por %p89, %p90
      %s93 = sadd.s32 %s92, 1
      %p96 = scmp.eq.s32.totalorder %s16, 2
      %p97 = scmp.ne.s32.totalorder %s92, %s94
      %p98 = scmp.eq.s32.totalorder %s16, 0
      %p99 = por %p97, %p98
      %p100 = scmp.ne.s32.totalorder %s92, %s94
      %p101 = scmp.eq.s32.totalorder %s21, 2
      %p102 = por %p100, %p101
      %p103 = scmp.ne.s32.totalorder %s94, %s95
      %p104 = scmp.eq.s32.totalorder %s21, 0
      %p105 = por %p103, %p104
      %p106 = scmp.ne.s32.totalorder %s94, %s95
      %p107 = scmp.eq.s32.totalorder %s22, 2
      %p108 = por %p106, %p107
      %p110 = scmp.ne.s32.totalorder %s95, %s109
      %p111 = scmp.eq.s32.totalorder %s22, 0
      %p112 = por %p110, %p111
      %s114 = sadd.s32 %s113, 1
      %p117 = scmp.eq.s32.totalorder %s16, 2
      %p118 = scmp.ne.s32.totalorder %s113, %s115
      %p119 = scmp.eq.s32.totalorder %s16, 0
      %p120 = por %p118, %p119
      %p121 = scmp.ne.s32.totalorder %s113, %s115
      %p122 = scmp.eq.s32.totalorder %s21, 2
      %p123 = por %p121, %p122
      %p124 = scmp.ne.s32.totalorder %s115, %s116
      %p125 = scmp.eq.s32.totalorder %s21, 0
      %p126 = por %p124, %p125
      %p127 = scmp.ne.s32.totalorder %s115, %s116
      %p128 = scmp.eq.s32.totalorder %s22, 2
      %p129 = por %p127, %p128
      %p131 = scmp.ne.s32.totalorder %s116, %s130
      %p132 = scmp.eq.s32.totalorder %s22, 0
      %p133 = por %p131, %p132
      %s135 = sadd.s32 %s134, 1
      %p138 = scmp.eq.s32.totalorder %s16, 2
      %p139 = scmp.ne.s32.totalorder %s134, %s136
      %p140 = scmp.eq.s32.totalorder %s16, 0
      %p141 = por %p139, %p140
      %p142 = scmp.ne.s32.totalorder %s134, %s136
      %p143 = scmp.eq.s32.totalorder %s21, 2
      %p144 = por %p142, %p143
      %p145 = scmp.ne.s32.totalorder %s136, %s137
      %p146 = scmp.eq.s32.totalorder %s21, 0
      %p147 = por %p145, %p146
      %p148 = scmp.ne.s32.totalorder %s136, %s137
      %p149 = scmp.eq.s32.totalorder %s22, 2
      %p150 = por %p148, %p149
      %p152 = scmp.ne.s32.totalorder %s137, %s151
      %p153 = scmp.eq.s32.totalorder %s22, 0
      %p154 = por %p152, %p153
      %s155 = ssub.s32 %s16, %s23
      %p156 = scmp.eq.s32.totalorder %s155, 0
      %s158 = sadd.s32 %s157, 1
      %s159 = scalar_select %p156, %s157, %s158
      %p162 = pneg %p156
      %p163 = scmp.eq.s32.totalorder %s16, 2
      %p164 = por %p162, %p163
      %p165 = scmp.ne.s32.totalorder %s157, %s160
      %p166 = scmp.eq.s32.totalorder %s16, 0
      %p167 = por %p165, %p166
      %p168 = scmp.ne.s32.totalorder %s157, %s160
      %p169 = scmp.eq.s32.totalorder %s21, 2
      %p170 = por %p168, %p169
      %p171 = scmp.ne.s32.totalorder %s160, %s161
      %p172 = scmp.eq.s32.totalorder %s21, 0
      %p173 = por %p171, %p172
      %p174 = scmp.ne.s32.totalorder %s160, %s161
      %p175 = scmp.eq.s32.totalorder %s22, 2
      %p176 = por %p174, %p175
      %p178 = scmp.ne.s32.totalorder %s161, %s177
      %p179 = scmp.eq.s32.totalorder %s22, 0
      %p180 = por %p178, %p179
      %p181 = scmp.le.s32.totalorder 1, %s16
      %p182 = scmp.lt.s32.totalorder %s16, 4
      %p183 = pnand %p181, %p182
      %p184 = pneg %p183
      // Predicated region
      $region9: #{tpu_custom_call.1} parent=5 // pred_check
        _
      $region10: #{tpu_custom_call.1} parent=5 // pred_check_branch
        %186 = sbr.rel (%p183) target = $region12
      $region11: #{tpu_custom_call.1} parent=5 // pred_region
        %s187 = ssub.s32 %s16, 1
        // Predicated region
        $region13: #{tpu_custom_call.1} parent=11 // pred_check
          %p188 = pneg %p63
        $region14: #{tpu_custom_call.1} parent=11 // pred_check_branch
          %190 = sbr.rel (%p188) target = $region16
        $region15: #{tpu_custom_call.1} parent=11 // pred_region
          _
        $region16: #{tpu_custom_call.1} parent=11 // pred_fallthru
          _
        // Predicated region
        $region17: #{tpu_custom_call.1} parent=11 // pred_check
          %p191 = pneg %p84
        $region18: #{tpu_custom_call.1} parent=11 // pred_check_branch
          %193 = sbr.rel (%p191) target = $region20
        $region19: #{tpu_custom_call.1} parent=11 // pred_region
          _
        $region20: #{tpu_custom_call.1} parent=11 // pred_fallthru
          _
        // Predicated region
        $region21: #{tpu_custom_call.1} parent=11 // pred_check
          %p194 = pneg %p105
        $region22: #{tpu_custom_call.1} parent=11 // pred_check_branch
          %196 = sbr.rel (%p194) target = $region24
        $region23: #{tpu_custom_call.1} parent=11 // pred_region
          _
        $region24: #{tpu_custom_call.1} parent=11 // pred_fallthru
          _
        // Predicated region
        $region25: #{tpu_custom_call.1} parent=11 // pred_check
          %p197 = pneg %p126
        $region26: #{tpu_custom_call.1} parent=11 // pred_check_branch
          %199 = sbr.rel (%p197) target = $region28
        $region27: #{tpu_custom_call.1} parent=11 // pred_region
          _
        $region28: #{tpu_custom_call.1} parent=11 // pred_fallthru
          _
        // Predicated region
        $region29: #{tpu_custom_call.1} parent=11 // pred_check
          %p200 = pneg %p147
        $region30: #{tpu_custom_call.1} parent=11 // pred_check_branch
          %202 = sbr.rel (%p200) target = $region32
        $region31: #{tpu_custom_call.1} parent=11 // pred_region
          _
        $region32: #{tpu_custom_call.1} parent=11 // pred_fallthru
          _
      $region12: #{tpu_custom_call.1} parent=5 // pred_fallthru
        _
      %p203 = scmp.lt.s32.totalorder %s16, 3
      // Predicated region
      $region33: #{tpu_custom_call.1} parent=5 // pred_check
        %p204 = pneg %p203
      $region34: #{tpu_custom_call.1} parent=5 // pred_check_branch
        %206 = sbr.rel (%p204) target = $region36
      $region35: #{tpu_custom_call.1} parent=5 // pred_region
        // Predicated region
        $region37: #{tpu_custom_call.1} parent=35 // pred_check
          %p207 = pneg %p36
        $region38: #{tpu_custom_call.1} parent=35 // pred_check_branch
          %209 = sbr.rel (%p207) target = $region40
        $region39: #{tpu_custom_call.1} parent=35 // pred_region
          %s210 = smul.u32 16, %s16
          %s211 = ssub.s32 38, %s210
          %p212 = scmp.lt.s32.totalorder %s211, 16
          %s213 = scalar_select %p212, %s211, 16
          %s214 = smul.u32 128, %s213
          %p215 = scmp.lt.s32.totalorder %s210, 37
          %s216 = scalar_select %p215, %s210, 37
          %s217 = smul.addr %s216, 8
          %s218 = scalar_lea.vmem %s0, %s217
          %s219 = smul.u32 16, %s16
          %s220 = ssub.s32 38, %s219
          %p221 = scmp.lt.s32.totalorder %s220, 16
          %s222 = scalar_select %p221, %s220, 16
          %s223 = smul.u32 128, %s222
        $region40: #{tpu_custom_call.1} parent=35 // pred_fallthru
          _
      $region36: #{tpu_custom_call.1} parent=5 // pred_fallthru
        _
      %p224 = scmp.le.s32.totalorder 1, %s16
      %p225 = scmp.lt.s32.totalorder %s16, 4
      %p226 = pnand %p224, %p225
      %p227 = pneg %p226
      // Predicated region
      $region41: #{tpu_custom_call.1} parent=5 // pred_check
        _
      $region42: #{tpu_custom_call.1} parent=5 // pred_check_branch
        %229 = sbr.rel (%p226) target = $region44
      $region43: #{tpu_custom_call.1} parent=5 // pred_region
        %s230 = ssub.s32 %s16, 1
        %s231 = smul.u32 16, %s21
        %s232 = ssub.s32 38, %s231
        %p233 = scmp.lt.s32.totalorder %s232, 16
        %s234 = scalar_select %p233, %s232, 16
        %s235 = smul.u32 128, %s234
        %p236 = scmp.lt.s32.totalorder %s231, 37
        %s237 = scalar_select %p236, %s231, 37
        %s238 = smul.addr %s237, 8
        %s239 = scalar_lea.vmem %s0, %s238
        %p240 = pneg %p42
        %p241 = pneg %p39
        %p242 = pneg %p63
        %p243 = pneg %p60
        %p244 = pneg %p84
        %p245 = pneg %p81
        %p246 = pneg %p105
        %p247 = pneg %p102
        %p248 = pneg %p126
        %p249 = pneg %p123
        %p250 = pneg %p147
        %p251 = pneg %p144
        %p252 = pneg %p173
        %p253 = pneg %p170
        %s254 = sand.u32 %s160, 1
        %s255 = scalar_lea.sflag [#allocation4], %s254
        %s256 = sand.u32 %s160, 1
        %s257 = scalar_lea.vmem [#allocation3], %s256
        %s258 = smul.u32 16, %s21
        %s259 = ssub.s32 38, %s258
        %p260 = scmp.lt.s32.totalorder %s259, 16
        %s261 = scalar_select %p260, %s259, 16
        %s262 = smul.u32 128, %s261
        %p263 = scmp.lt.s32.totalorder %s258, 37
        %s264 = scalar_select %p263, %s258, 37
        %s265 = smul.addr %s264, 8
        %s266 = scalar_lea.vmem %s0, %s265
        %s267 = smul.u32 16, %s21
        %s268 = ssub.s32 38, %s267
        %p269 = scmp.lt.s32.totalorder %s268, 16
        %s270 = scalar_select %p269, %s268, 16
        %s271 = smul.u32 128, %s270
        %v272 = vld [vmem:[%s266] sm:$0xff]
        %v273 = vld [vmem:[%s266 + $0x8] sm:$0xff]
        %v274 = vld [vmem:[%s266 + $0x10] sm:$0xff]
        %v275 = vld [vmem:[%s266 + $0x18] sm:$0xff]
        %v276 = vld [vmem:[%s266 + $0x20] sm:$0xff]
        %v277 = vld [vmem:[%s266 + $0x28] sm:$0xff]
        %v278 = vld [vmem:[%s266 + $0x30] sm:$0xff]
        %v279 = vld [vmem:[%s266 + $0x38] sm:$0xff]
        %v280 = vld [vmem:[%s266 + $0x40] sm:$0xff]
        %v281 = vld [vmem:[%s266 + $0x48] sm:$0xff]
        %v282 = vld [vmem:[%s266 + $0x50] sm:$0xff]
        %v283 = vld [vmem:[%s266 + $0x58] sm:$0xff]
        %v284 = vld [vmem:[%s266 + $0x60] sm:$0xff]
        %v285 = vld [vmem:[%s266 + $0x68] sm:$0xff]
        %v286 = vld [vmem:[%s266 + $0x70] sm:$0xff]
        %v287 = vld [vmem:[%s266 + $0x78] sm:$0xff]
        %v288 = vld [vmem:[%s1] sm:$0xff]
        %v289 = vld [vmem:[%s1 + $0x8] sm:$0xff]
        %vm290 = vcmask 261120
        %v292 = vsel %vm290, %v288, 0
        %v295 = vsel %vm290, %v289, 0
        %v298 = vsel %vm290, %v272, 0
        %v301 = vsel %vm290, %v273, 0
        %v304 = vsel %vm290, %v274, 0
        %v307 = vsel %vm290, %v275, 0
        %v310 = vsel %vm290, %v276, 0
        %v313 = vsel %vm290, %v277, 0
        %v316 = vsel %vm290, %v278, 0
        %v319 = vsel %vm290, %v279, 0
        %v322 = vsel %vm290, %v280, 0
        %v325 = vsel %vm290, %v281, 0
        %v328 = vsel %vm290, %v282, 0
        %v331 = vsel %vm290, %v283, 0
        %v334 = vsel %vm290, %v284, 0
        %v337 = vsel %vm290, %v285, 0
        %v340 = vsel %vm290, %v286, 0
        %v343 = vsel %vm290, %v287, 0
        %345 = vmatprep.subr.mxu0 0.0
        %346 = vmatpush1.xpose.msra.mxu0 %v298
        %347 = vmatprep.subr.mxu0 0.0
        %348 = vmatpush1.xpose.msra.mxu0 %v301
        %349 = vmatprep.subr.mxu0 0.0
        %350 = vmatpush1.xpose.msra.mxu0 %v304
        %351 = vmatprep.subr.mxu0 0.0
        %352 = vmatpush1.xpose.msra.mxu0 %v307
        %353 = vmatprep.subr.mxu0 0.0
        %354 = vmatpush1.xpose.msra.mxu0 %v310
        %355 = vmatprep.subr.mxu0 0.0
        %356 = vmatpush1.xpose.msra.mxu0 %v313
        %357 = vmatprep.subr.mxu0 0.0
        %358 = vmatpush1.xpose.msra.mxu0 %v316
        %359 = vmatprep.subr.mxu0 0.0
        %360 = vmatpush1.xpose.msra.mxu0 %v319
        %361 = vmatprep.subr.mxu0 0.0
        %362 = vmatpush1.xpose.msra.mxu0 %v322
        %363 = vmatprep.subr.mxu0 0.0
        %364 = vmatpush1.xpose.msra.mxu0 %v325
        %365 = vmatprep.subr.mxu0 0.0
        %366 = vmatpush1.xpose.msra.mxu0 %v328
        %367 = vmatprep.subr.mxu0 0.0
        %368 = vmatpush1.xpose.msra.mxu0 %v331
        %369 = vmatprep.subr.mxu0 0.0
        %370 = vmatpush1.xpose.msra.mxu0 %v334
        %371 = vmatprep.subr.mxu0 0.0
        %372 = vmatpush1.xpose.msra.mxu0 %v337
        %373 = vmatprep.subr.mxu0 0.0
        %374 = vmatpush1.xpose.msra.mxu0 %v340
        %375 = vmatprep.subr.mxu0 0.0
        %376 = vmatpush1.xpose.msra.mxu0 %v343
        %377 = vmatprep.subr.mxu0 0.0
        %378 = vmatpush1.xpose.msra.mxu0 0.0
        %379 = vmatprep.subr.mxu0 0.0
        %380 = vmatpush1.xpose.msra.mxu0 0.0
        %381 = vmatprep.subr.mxu0 0.0
        %382 = vmatpush1.xpose.msra.mxu0 0.0
        %383 = vmatprep.subr.mxu0 0.0
        %384 = vmatpush1.xpose.msra.mxu0 0.0
        %385 = vmatprep.subr.mxu0 0.0
        %386 = vmatpush1.xpose.msra.mxu0 0.0
        %387 = vmatprep.subr.mxu0 0.0
        %388 = vmatpush1.xpose.msra.mxu0 0.0
        %389 = vmatprep.subr.mxu0 0.0
        %390 = vmatpush1.xpose.msra.mxu0 0.0
        %391 = vmatprep.subr.mxu0 0.0
        %392 = vmatpush1.xpose.msra.mxu0 0.0
        %393 = vmatprep.subr.mxu0 0.0
        %394 = vmatpush1.xpose.msra.mxu0 0.0
        %395 = vmatprep.subr.mxu0 0.0
        %396 = vmatpush1.xpose.msra.mxu0 0.0
        %397 = vmatprep.subr.mxu0 0.0
        %398 = vmatpush1.xpose.msra.mxu0 0.0
        %399 = vmatprep.subr.mxu0 0.0
        %400 = vmatpush1.xpose.msra.mxu0 0.0
        %401 = vmatprep.subr.mxu0 0.0
        %402 = vmatpush1.xpose.msra.mxu0 0.0
        %403 = vmatprep.subr.mxu0 0.0
        %404 = vmatpush1.xpose.msra.mxu0 0.0
        %405 = vmatprep.subr.mxu0 0.0
        %406 = vmatpush1.xpose.msra.mxu0 0.0
        %407 = vmatprep.subr.mxu0 0.0
        %408 = vmatpush1.xpose.msra.mxu0 0.0
        %409 = vmatprep.mubr.f32.mxu0 0.0
        %410 = vmatmul.mubr.f32.gmra.mrb[0].mxu0 %v292
        %v411 = vpop.f32.mrb[0].mxu0
        %v412 = vadd.f32 0.0, %v411
        %v413 = vpop.f32.mrb[0].mxu0
        %414 = vmatprep.mubr.f32.mxu0 0.0
        %415 = vmatmul.mubr.f32.gmra.mrb[0].mxu0 %v295
        %v416 = vpop.f32.mrb[0].mxu0
        %v417 = vadd.f32 0.0, %v416
        %v418 = vpop.f32.mrb[0].mxu0
        %419 = vdwg.mxu0
        %v420 = vmul.f32 %v412, 0.01
        %v421 = vmul.f32 %v417, 0.01
        %v422 = vmax.f32 %v412, %v420
        %v423 = vmax.f32 %v417, %v421
        %v424 = vld [vmem:[%s2] sm:$0xff]
        %v425 = vld [vmem:[%s2 + $0x8] sm:$0xff]
        %v426 = vld [vmem:[%s3] sm:$0xff]
        %v427 = vld [vmem:[%s3 + $0x8] sm:$0xff]
        %429 = vset.pattern.permute.xlu0 0
        %430 = vperm.xlu0 %429, %v426
        %v431 = vpop.permute.xlu0 %430
        %434 = vset.pattern.permute.xlu0 0
        %435 = vperm.xlu0 %434, %v427
        %v436 = vpop.permute.xlu0 %435
        %vm438 = vcmask 130048
        %v440 = vsel %vm438, %v424, 0
        %v443 = vsel %vm438, %v425, 0
        %445 = vmatprep.subr.mxu0 0.0
        %446 = vmatpush1.msra.mxu0 %v422
        %447 = vmatprep.subr.mxu0 0.0
        %448 = vmatpush1.msra.mxu0 %v423
        %449 = vmatprep.subr.mxu0 0.0
        %450 = vmatpush1.msra.mxu0 0.0
        %451 = vmatprep.subr.mxu0 0.0
        %452 = vmatpush1.msra.mxu0 0.0
        %453 = vmatprep.subr.mxu0 0.0
        %454 = vmatpush1.msra.mxu0 0.0
        %455 = vmatprep.subr.mxu0 0.0
        %456 = vmatpush1.msra.mxu0 0.0
        %457 = vmatprep.subr.mxu0 0.0
        %458 = vmatpush1.msra.mxu0 0.0
        %459 = vmatprep.subr.mxu0 0.0
        %460 = vmatpush1.msra.mxu0 0.0
        %461 = vmatprep.subr.mxu0 0.0
        %462 = vmatpush1.msra.mxu0 0.0
        %463 = vmatprep.subr.mxu0 0.0
        %464 = vmatpush1.msra.mxu0 0.0
        %465 = vmatprep.subr.mxu0 0.0
        %466 = vmatpush1.msra.mxu0 0.0
        %467 = vmatprep.subr.mxu0 0.0
        %468 = vmatpush1.msra.mxu0 0.0
        %469 = vmatprep.subr.mxu0 0.0
        %470 = vmatpush1.msra.mxu0 0.0
        %471 = vmatprep.subr.mxu0 0.0
        %472 = vmatpush1.msra.mxu0 0.0
        %473 = vmatprep.subr.mxu0 0.0
        %474 = vmatpush1.msra.mxu0 0.0
        %475 = vmatprep.subr.mxu0 0.0
        %476 = vmatpush1.msra.mxu0 0.0
        %477 = vmatprep.subr.mxu0 0.0
        %478 = vmatpush1.msra.mxu0 0.0
        %479 = vmatprep.subr.mxu0 0.0
        %480 = vmatpush1.msra.mxu0 0.0
        %481 = vmatprep.subr.mxu0 0.0
        %482 = vmatpush1.msra.mxu0 0.0
        %483 = vmatprep.subr.mxu0 0.0
        %484 = vmatpush1.msra.mxu0 0.0
        %485 = vmatprep.subr.mxu0 0.0
        %486 = vmatpush1.msra.mxu0 0.0
        %487 = vmatprep.subr.mxu0 0.0
        %488 = vmatpush1.msra.mxu0 0.0
        %489 = vmatprep.subr.mxu0 0.0
        %490 = vmatpush1.msra.mxu0 0.0
        %491 = vmatprep.subr.mxu0 0.0
        %492 = vmatpush1.msra.mxu0 0.0
        %493 = vmatprep.subr.mxu0 0.0
        %494 = vmatpush1.msra.mxu0 0.0
        %495 = vmatprep.subr.mxu0 0.0
        %496 = vmatpush1.msra.mxu0 0.0
        %497 = vmatprep.subr.mxu0 0.0
        %498 = vmatpush1.msra.mxu0 0.0
        %499 = vmatprep.subr.mxu0 0.0
        %500 = vmatpush1.msra.mxu0 0.0
        %501 = vmatprep.subr.mxu0 0.0
        %502 = vmatpush1.msra.mxu0 0.0
        %503 = vmatprep.subr.mxu0 0.0
        %504 = vmatpush1.msra.mxu0 0.0
        %505 = vmatprep.subr.mxu0 0.0
        %506 = vmatpush1.msra.mxu0 0.0
        %507 = vmatprep.subr.mxu0 0.0
        %508 = vmatpush1.msra.mxu0 0.0
        %509 = vmatprep.mubr.f32.mxu0 0.0
        %510 = vmatmul.mubr.f32.gmra.mrb[0].mxu0 %v440
        %v511 = vpop.f32.mrb[0].mxu0
        %v512 = vadd.f32 %v431, %v511
        %v513 = vpop.f32.mrb[0].mxu0
        %514 = vmatprep.mubr.f32.mxu0 0.0
        %515 = vmatmul.mubr.f32.gmra.mrb[0].mxu0 %v443
        %v516 = vpop.f32.mrb[0].mxu0
        %v517 = vadd.f32 %v436, %v516
        %v518 = vpop.f32.mrb[0].mxu0
        %519 = vdwg.mxu0
        %v520 = vmul.f32 %v512, 0.01
        %v521 = vmul.f32 %v517, 0.01
        %v522 = vmax.f32 %v512, %v520
        %v523 = vmax.f32 %v517, %v521
        %v524 = vld [vmem:[%s4] sm:$0xff]
        %v525 = vld [vmem:[%s4 + $0x8] sm:$0xff]
        %527 = vset.pattern.permute.xlu0 0
        %528 = vperm.xlu0 %527, %v524
        %v529 = vpop.permute.xlu0 %528
        %532 = vset.pattern.permute.xlu0 0
        %533 = vperm.xlu0 %532, %v525
        %v534 = vpop.permute.xlu0 %533
        %v536 = vmul.f32 %v522, %v529
        %v537 = vmul.f32 %v523, %v534
        %v538 = vadd.f32 %v536, %v537
        %v539 = vrot.slane %v538, 4
        %v540 = vadd.f32 %v538, %v539
        %v541 = vrot.slane %v540, 2
        %v542 = vadd.f32 %v540, %v541
        %v543 = vrot.slane %v542, 1
        %v544 = vadd.f32 %v542, %v543
        %s545 = sld [smem:[#allocation2]]
        %v546 = vstv %s545
        %v547 = vadd.f32 %v544, %v546
        %548 = vst [vmem:[%s257] sm:$0x1] %v547
        %s549 = sand.u32 %s160, 1
        %s550 = scalar_lea.sflag [#allocation4], %s549
        %s551 = sand.u32 %s160, 1
        %s552 = scalar_lea.vmem [#allocation3], %s551
        // Predicated region
        $region45: #{tpu_custom_call.1} parent=43 // pred_check
          %p553 = pneg %p170
        $region46: #{tpu_custom_call.1} parent=43 // pred_check_branch
          %555 = sbr.rel (%p553) target = $region48
        $region47: #{tpu_custom_call.1} parent=43 // pred_region
          %s557 = ssub.s32 16, 16
          %558 = vsyncadd %s550, %s557
          %s559 = smul.addr %s21, 16
          %s560 = scalar_lea.hbm %s6, %s559
          %s562 = sshll.u32 %s552, 4
          %s563 = int_to_ptr.vmem [resolvable:$true] %s562
          %565 = dma.vmem_to_hbm [thread:$0]  %s563, 16, %s560, %s550
        $region48: #{tpu_custom_call.1} parent=43 // pred_fallthru
          _
      $region44: #{tpu_custom_call.1} parent=5 // pred_fallthru
        _
      %p566 = scmp.le.s32.totalorder 2, %s16
      // Predicated region
      $region49: #{tpu_custom_call.1} parent=5 // pred_check
        %p567 = pneg %p566
      $region50: #{tpu_custom_call.1} parent=5 // pred_check_branch
        %569 = sbr.rel (%p567) target = $region52
      $region51: #{tpu_custom_call.1} parent=5 // pred_region
        %s570 = ssub.s32 %s16, 2
        // Predicated region
        $region53: #{tpu_custom_call.1} parent=51 // pred_check
          %p571 = pneg %p176
        $region54: #{tpu_custom_call.1} parent=51 // pred_check_branch
          %573 = sbr.rel (%p571) target = $region56
        $region55: #{tpu_custom_call.1} parent=51 // pred_region
          %s574 = sand.u32 %s161, 1
          %s575 = scalar_lea.sflag [#allocation4], %s574
          %s576 = sand.u32 %s161, 1
          %s577 = scalar_lea.vmem [#allocation3], %s576
          %578 = dma.done %s575, 16
        $region56: #{tpu_custom_call.1} parent=51 // pred_fallthru
          _
      $region52: #{tpu_custom_call.1} parent=5 // pred_fallthru
        _
    $region6: #{tpu_custom_call.1} parent=1 // loop_footer
      %s20 = sadd.s32 1, %s16
    $region7: #{tpu_custom_call.1} parent=1 // loop_footer_branch
      %15 = sbr.rel target = $region3
    $region8: #{tpu_custom_call.1} parent=1 // loop_exit
      _
    %579 = vsyncpa [#allocation4], 1
    %s580 = scalar_lea.sflag [#allocation4], 1
    %581 = vsyncpa %s580, 1

</llo_original>
